<compile_context>
chip_gen: v7x
topology: tpu7x:2x2x1
jax: 0.10.0
libtpu: 0.0.40
codegen_flags: <defaults>
</compile_context>

<pallas_src>
import functools

import numpy as np
import jax
import jax.numpy as jnp
from jax.experimental import pallas as pl
from jax.experimental.pallas import tpu as pltpu


def _round_up(x, m):
    return ((x + m - 1) // m) * m


def _conv_kernel_body(geo_at_ref, geo_b_ref, wf_ref, out_ref, acc_ref, *,
                      n_basis, spacing, gamma, inv_norm, d_clamp):
    """One (batch, a_tile, b_tile) grid step; b is the reduction axis."""
    b_step = pl.program_id(2)

    @pl.when(b_step == 0)
    def _():
        acc_ref[...] = jnp.zeros_like(acc_ref)

    gat = geo_at_ref[0]   # [3, TA]  (out-point coordinates, transposed in wrapper)
    gb = geo_b_ref[0]     # [TB, 3]  (in-point coordinates)

    # Pairwise squared distances, built directly as a lane-dense [TB, TA] tile
    # (TA on the lane axis):  d2[b, a] = sum_c (gb[b, c] - ga[a, c])^2
    # No [TB, TA, 3] intermediate, no cross-lane reduce; exact f32 on the VPU.
    d2 = jnp.zeros((gb.shape[0], gat.shape[1]), jnp.float32)
    for c in range(3):
        diff_c = gb[:, c:c + 1] - gat[c:c + 1, :]          # [TB,1]-[1,TA] -> [TB,TA]
        d2 = d2 + diff_c * diff_c
    d = jnp.sqrt(d2)

    # Gaussian radial basis via factorization (3 EUP tiles total: sqrt, 2x exp):
    #   rbf_m(d) = exp(-gamma*(d - m*s)^2)
    #            = exp(-gamma*d^2) * exp(2*gamma*s*d)^m * exp(-gamma*m^2*s^2)
    # Recurrence:  rbf_0 = e0,  g_0 = e1 * exp(-gamma*s^2)
    #              rbf_{m+1} = rbf_m * g_m,   g_{m+1} = g_m * q
    # with q = exp(-2*gamma*s^2) a compile-time scalar.
    # d is clamped before e1: for d > d_clamp every basis underflows (< e^-32),
    # and clamping prevents exp(d/s) from overflowing f32 (inf * 0 -> NaN).
    dc = jnp.minimum(d, d_clamp)
    e0 = jnp.exp(-gamma * d2)                              # [TB, TA]
    e1 = jnp.exp((2.0 * gamma * spacing) * dc)             # [TB, TA]
    g0 = e1 * float(np.exp(-gamma * spacing ** 2))
    q = float(np.exp(-2.0 * gamma * spacing ** 2))

    def body(m, carry):
        rbf, g = carry
        wf_m = wf_ref[0, m]                                # [C_OUT, TB]
        # Lane-dense [C_OUT,TB] x [TB,TA] MXU matmul, accumulated in f32
        # directly into the (C_OUT, TA) accumulator (only a few vregs).
        acc_ref[...] += jax.lax.dot_general(
            wf_m, rbf, (((1,), (0,)), ((), ())),
            preferred_element_type=jnp.float32)            # [C_OUT, TA]
        return rbf * g, g * q

    jax.lax.fori_loop(0, n_basis, body, (e0, g0), unroll=(n_basis <= 8))

    @pl.when(b_step == pl.num_programs(2) - 1)
    def _():
        # [C_OUT, TA] writeback: TA (multiple of 128) is the lane axis, so this
        # is an unmasked vst, and b has already been reduced away.
        out_ref[0] = (acc_ref[...] * inv_norm).astype(out_ref.dtype)


def convolution(features, geometry, weight, *, r_max, out_geometry=None,
                n_norm=1, tile_a=512, tile_b=512):
    """Pallas forward of Convolution with a scalar-irrep Gaussian radial kernel.

    features : [batch, in_point, C_IN]
    geometry : [batch, in_point, 3]
    weight   : [R_BASIS, C_OUT, C_IN]     (learned radial-kernel weights)
    returns  : [batch, out_point, C_OUT]
    """
    if out_geometry is None:
        out_geometry = geometry

    batch, n_in, c_in = features.shape
    n_out = out_geometry.shape[1]
    n_basis, c_out, c_in_w = weight.shape
    assert c_in_w == c_in
    assert geometry.shape == (batch, n_in, 3)
    assert out_geometry.shape == (batch, n_out, 3)

    spacing = float(r_max) / max(n_basis - 1, 1)
    gamma = 1.0 / (2.0 * spacing ** 2)
    inv_norm = 1.0 / (float(n_norm) ** 0.5)
    # Beyond d_clamp every Gaussian basis value is < exp(-32); clamping there
    # keeps exp(2*gamma*spacing*d) finite in f32.
    d_clamp = float(r_max) + 8.0 * spacing

    # Hoisted feat @ W contraction (tiny; plain XLA, once per call), already
    # laid out so the point axis b is minor downstream:
    #   wf[z, m, i, b] = sum_j W[m, i, j] * feat[z, b, j]
    wf = jnp.einsum('zbj,mij->zmib',
                    features.astype(jnp.float32), weight.astype(jnp.float32))

    # Lane-aligned tiles (multiples of 128).  Padded in-points (b) get zero wf
    # columns, so they contribute exactly nothing; padded out-points (a) produce
    # rows that are sliced off below.
    ta = min(_round_up(tile_a, 128), _round_up(n_out, 128))
    tb = min(_round_up(tile_b, 128), _round_up(n_in, 128))
    a_pad = _round_up(n_out, ta)
    b_pad = _round_up(n_in, tb)

    # v7x megacore: keep >= 2 (batch, a)-tiles so both TensorCores get work.
    while batch * (a_pad // ta) < 2 and ta > 128:
        ta //= 2
        a_pad = _round_up(n_out, ta)

    geo_at = jnp.pad(out_geometry.astype(jnp.float32),
                     ((0, 0), (0, a_pad - n_out), (0, 0))
                     ).transpose(0, 2, 1)                               # [z, 3, A_pad]
    geo_b = jnp.pad(geometry.astype(jnp.float32),
                    ((0, 0), (0, b_pad - n_in), (0, 0)))                # [z, B_pad, 3]
    wf = jnp.pad(wf, ((0, 0), (0, 0), (0, 0), (0, b_pad - n_in)))       # [z, R, C_OUT, B_pad]

    kernel = functools.partial(
        _conv_kernel_body,
        n_basis=n_basis, spacing=spacing, gamma=gamma,
        inv_norm=inv_norm, d_clamp=d_clamp)

    out_t = pl.pallas_call(
        kernel,
        out_shape=jax.ShapeDtypeStruct((batch, c_out, a_pad), features.dtype),
        grid_spec=pltpu.PrefetchScalarGridSpec(
            num_scalar_prefetch=0,
            grid=(batch, a_pad // ta, b_pad // tb),
            in_specs=[
                pl.BlockSpec((1, 3, ta), lambda z, a, b: (z, 0, a)),
                pl.BlockSpec((1, tb, 3), lambda z, a, b: (z, b, 0)),
                pl.BlockSpec((1, n_basis, c_out, tb), lambda z, a, b: (z, 0, 0, b)),
            ],
            out_specs=pl.BlockSpec((1, c_out, ta), lambda z, a, b: (z, 0, a)),
            scratch_shapes=[pltpu.VMEM((c_out, ta), jnp.float32)],
        ),
        compiler_params=pltpu.CompilerParams(
            dimension_semantics=("parallel", "parallel", "arbitrary")),
    )(geo_at, geo_b, wf)

    # One transpose back in the wrapper; padded a-rows sliced off.
    return out_t.transpose(0, 2, 1)[:, :n_out, :]


def convolution_ref(features, geometry, weight, *, r_max, out_geometry=None, n_norm=1):
    """Pure-JAX reference mirroring the PyTorch Convolution.forward."""
    if out_geometry is None:
        out_geometry = geometry
    n_basis = weight.shape[0]
    spacing = float(r_max) / max(n_basis - 1, 1)
    gamma = 1.0 / (2.0 * spacing ** 2)

    rb = geometry[:, None, :, :]                       # [z, 1, b, 3]
    ra = out_geometry[:, :, None, :]                   # [z, a, 1, 3]
    diff = rb - ra                                     # [z, a, b, 3]
    d = jnp.sqrt(jnp.sum(diff * diff, axis=-1))        # [z, a, b]
    centers = jnp.arange(n_basis, dtype=jnp.float32) * spacing
    rbf = jnp.exp(-gamma * (d[..., None] - centers) ** 2)        # [z, a, b, R]
    k = jnp.einsum('zabm,mij->zabij', rbf, weight) / (float(n_norm) ** 0.5)
    return jnp.einsum('zabij,zbj->zai', k, features)             # [z, a, C_OUT]


if __name__ == "__main__":
    BATCH, N_POINTS, C_IN, C_OUT, R_BASIS = 2, 16, 4, 8, 4
    R_MAX = 2.0
    N_NORM = 1

    key = jax.random.PRNGKey(0)
    kf, kg, kw = jax.random.split(key, 3)
    features = jax.random.normal(kf, (BATCH, N_POINTS, C_IN), dtype=jnp.float32)
    geometry = jax.random.normal(kg, (BATCH, N_POINTS, 3), dtype=jnp.float32)
    # deterministic "learned" radial-kernel weights
    weight = jax.random.normal(kw, (R_BASIS, C_OUT, C_IN), dtype=jnp.float32)
    weight = weight / jnp.sqrt(jnp.float32(R_BASIS * C_IN))

    out = convolution(features, geometry, weight, r_max=R_MAX, n_norm=N_NORM)
    out = jax.block_until_ready(out)
    assert out.shape == (BATCH, N_POINTS, C_OUT)

    ref = convolution_ref(features, geometry, weight, r_max=R_MAX, n_norm=N_NORM)
    np.testing.assert_allclose(np.asarray(out), np.asarray(ref),
                               rtol=1e-3, atol=1e-3)
    print("KERNEL_OK")
</pallas_src>

<mosaic_0001>
module attributes {stable_mosaic.version = 11 : i64} {
  func.func @_conv_kernel_body(%arg0: i32, %arg1: i32, %arg2: i32, %arg3: memref<1x3x128xf32, #tpu.memory_space<vmem>>, %arg4: memref<1x128x3xf32, #tpu.memory_space<vmem>>, %arg5: memref<1x4x8x128xf32, #tpu.memory_space<vmem>>, %arg6: memref<1x8x128xf32, #tpu.memory_space<vmem>>, %arg7: memref<8x128xf32, #tpu.memory_space<vmem>>) attributes {dimension_semantics = [#tpu.dimension_semantics<parallel>, #tpu.dimension_semantics<parallel>, #tpu.dimension_semantics<arbitrary>], iteration_bounds = array<i64: 2, 1, 1>, scalar_prefetch = 0 : i64, scratch_operands = 1 : i64, tpu.core_type = #tpu.core_type<tc>, window_params = [{transform_indices = @transform_0, window_bounds = array<i64: 1, 3, 128>}, {transform_indices = @transform_1, window_bounds = array<i64: 1, 128, 3>}, {transform_indices = @transform_2, window_bounds = array<i64: 1, 4, 8, 128>}, {transform_indices = @transform_3, window_bounds = array<i64: 1, 8, 128>}]} {
    %c0_i32 = arith.constant 0 : i32
    %0 = arith.cmpi eq, %arg2, %c0_i32 : i32
    %1 = arith.extui %0 : i1 to i32
    %c0_i32_0 = arith.constant 0 : i32
    %2 = arith.cmpi ne, %1, %c0_i32_0 : i32
    scf.if %2 {
      %cst_49 = arith.constant 0.000000e+00 : f32
      %83 = vector.broadcast %cst_49 : f32 to vector<8x128xf32>
      %c0_50 = arith.constant 0 : index
      %c0_51 = arith.constant 0 : index
      %84 = vector.load %arg7[%c0_50, %c0_51] : memref<8x128xf32, #tpu.memory_space<vmem>>, vector<8x128xf32>
      tpu.vector_store %arg7[%c0_50, %c0_51], %83 {strides = array<i32>} : memref<8x128xf32, #tpu.memory_space<vmem>>, vector<8x128xf32>,
    } else {
    }
    %c0 = arith.constant 0 : index
    %c0_1 = arith.constant 0 : index
    %c0_2 = arith.constant 0 : index
    %3 = vector.load %arg3[%c0, %c0_1, %c0_2] : memref<1x3x128xf32, #tpu.memory_space<vmem>>, vector<1x3x128xf32>
    %4 = vector.shape_cast %3 : vector<1x3x128xf32> to vector<3x128xf32>
    %c0_3 = arith.constant 0 : index
    %c0_4 = arith.constant 0 : index
    %c0_5 = arith.constant 0 : index
    %5 = vector.load %arg4[%c0_3, %c0_4, %c0_5] : memref<1x128x3xf32, #tpu.memory_space<vmem>>, vector<1x128x3xf32>
    %6 = vector.shape_cast %5 : vector<1x128x3xf32> to vector<128x3xf32>
    %cst = arith.constant 0.000000e+00 : f32
    %7 = vector.broadcast %cst : f32 to vector<128x128xf32>
    %8 = vector.extract_strided_slice %6 {offsets = [0, 0], sizes = [128, 1], strides = [1, 1]} : vector<128x3xf32> to vector<128x1xf32>
    %9 = vector.extract_strided_slice %4 {offsets = [0, 0], sizes = [1, 128], strides = [1, 1]} : vector<3x128xf32> to vector<1x128xf32>
    %10 = vector.broadcast %8 : vector<128x1xf32> to vector<128x128xf32>
    %11 = vector.broadcast %9 : vector<1x128xf32> to vector<128x128xf32>
    %12 = arith.subf %10, %11 : vector<128x128xf32>
    %13 = arith.mulf %12, %12 : vector<128x128xf32>
    %14 = arith.addf %7, %13 : vector<128x128xf32>
    %15 = vector.extract_strided_slice %6 {offsets = [0, 1], sizes = [128, 1], strides = [1, 1]} : vector<128x3xf32> to vector<128x1xf32>
    %16 = vector.extract_strided_slice %4 {offsets = [1, 0], sizes = [1, 128], strides = [1, 1]} : vector<3x128xf32> to vector<1x128xf32>
    %17 = vector.broadcast %15 : vector<128x1xf32> to vector<128x128xf32>
    %18 = vector.broadcast %16 : vector<1x128xf32> to vector<128x128xf32>
    %19 = arith.subf %17, %18 : vector<128x128xf32>
    %20 = arith.mulf %19, %19 : vector<128x128xf32>
    %21 = arith.addf %14, %20 : vector<128x128xf32>
    %22 = vector.extract_strided_slice %6 {offsets = [0, 2], sizes = [128, 1], strides = [1, 1]} : vector<128x3xf32> to vector<128x1xf32>
    %23 = vector.extract_strided_slice %4 {offsets = [2, 0], sizes = [1, 128], strides = [1, 1]} : vector<3x128xf32> to vector<1x128xf32>
    %24 = vector.broadcast %22 : vector<128x1xf32> to vector<128x128xf32>
    %25 = vector.broadcast %23 : vector<1x128xf32> to vector<128x128xf32>
    %26 = arith.subf %24, %25 : vector<128x128xf32>
    %27 = arith.mulf %26, %26 : vector<128x128xf32>
    %28 = arith.addf %21, %27 : vector<128x128xf32>
    %29 = math.sqrt %28 : vector<128x128xf32>
    %cst_6 = arith.constant 7.33333349 : f32
    %30 = vector.broadcast %cst_6 : f32 to vector<128x128xf32>
    %31 = arith.minimumf %29, %30 : vector<128x128xf32>
    %cst_7 = arith.constant -1.125000e+00 : f32
    %32 = vector.broadcast %cst_7 : f32 to vector<128x128xf32>
    %33 = arith.mulf %32, %28 : vector<128x128xf32>
    %34 = math.exp %33 : vector<128x128xf32>
    %cst_8 = arith.constant 1.500000e+00 : f32
    %35 = vector.broadcast %cst_8 : f32 to vector<128x128xf32>
    %36 = arith.mulf %35, %31 : vector<128x128xf32>
    %37 = math.exp %36 : vector<128x128xf32>
    %cst_9 = arith.constant 0.606530666 : f32
    %38 = vector.broadcast %cst_9 : f32 to vector<128x128xf32>
    %39 = arith.mulf %37, %38 : vector<128x128xf32>
    %c0_i32_10 = arith.constant 0 : i32
    %c0_11 = arith.constant 0 : index
    %40 = arith.index_cast %c0_i32_10 : i32 to index
    %c0_12 = arith.constant 0 : index
    %c0_13 = arith.constant 0 : index
    %41 = vector.load %arg5[%c0_11, %40, %c0_12, %c0_13] : memref<1x4x8x128xf32, #tpu.memory_space<vmem>>, vector<1x1x8x128xf32>
    %42 = vector.shape_cast %41 : vector<1x1x8x128xf32> to vector<8x128xf32>
    %c0_14 = arith.constant 0 : index
    %c0_15 = arith.constant 0 : index
    %43 = vector.load %arg7[%c0_14, %c0_15] : memref<8x128xf32, #tpu.memory_space<vmem>>, vector<8x128xf32>
    %cst_16 = arith.constant dense<0.000000e+00> : vector<8x128xf32>
    %44 = tpu.matmul %42, %34, %cst_16 {dimension_numbers = #tpu.dot_dimension_numbers<[1], [0], [0], [1], [0, 0, 1, 1], [], []>} : vector<8x128xf32>, vector<128x128xf32>, vector<8x128xf32> -> vector<8x128xf32>
    %45 = arith.addf %43, %44 : vector<8x128xf32>
    %c0_17 = arith.constant 0 : index
    %c0_18 = arith.constant 0 : index
    %46 = vector.load %arg7[%c0_17, %c0_18] : memref<8x128xf32, #tpu.memory_space<vmem>>, vector<8x128xf32>
    tpu.vector_store %arg7[%c0_17, %c0_18], %45 {strides = array<i32>} : memref<8x128xf32, #tpu.memory_space<vmem>>, vector<8x128xf32>,
    %47 = arith.mulf %34, %39 : vector<128x128xf32>
    %cst_19 = arith.constant 0.36787945 : f32
    %48 = vector.broadcast %cst_19 : f32 to vector<128x128xf32>
    %49 = arith.mulf %39, %48 : vector<128x128xf32>
    %c1_i32 = arith.constant 1 : i32
    %c0_20 = arith.constant 0 : index
    %50 = arith.index_cast %c1_i32 : i32 to index
    %c0_21 = arith.constant 0 : index
    %c0_22 = arith.constant 0 : index
    %51 = vector.load %arg5[%c0_20, %50, %c0_21, %c0_22] : memref<1x4x8x128xf32, #tpu.memory_space<vmem>>, vector<1x1x8x128xf32>
    %52 = vector.shape_cast %51 : vector<1x1x8x128xf32> to vector<8x128xf32>
    %c0_23 = arith.constant 0 : index
    %c0_24 = arith.constant 0 : index
    %53 = vector.load %arg7[%c0_23, %c0_24] : memref<8x128xf32, #tpu.memory_space<vmem>>, vector<8x128xf32>
    %cst_25 = arith.constant dense<0.000000e+00> : vector<8x128xf32>
    %54 = tpu.matmul %52, %47, %cst_25 {dimension_numbers = #tpu.dot_dimension_numbers<[1], [0], [0], [1], [0, 0, 1, 1], [], []>} : vector<8x128xf32>, vector<128x128xf32>, vector<8x128xf32> -> vector<8x128xf32>
    %55 = arith.addf %53, %54 : vector<8x128xf32>
    %c0_26 = arith.constant 0 : index
    %c0_27 = arith.constant 0 : index
    %56 = vector.load %arg7[%c0_26, %c0_27] : memref<8x128xf32, #tpu.memory_space<vmem>>, vector<8x128xf32>
    tpu.vector_store %arg7[%c0_26, %c0_27], %55 {strides = array<i32>} : memref<8x128xf32, #tpu.memory_space<vmem>>, vector<8x128xf32>,
    %57 = arith.mulf %47, %49 : vector<128x128xf32>
    %cst_28 = arith.constant 0.36787945 : f32
    %58 = vector.broadcast %cst_28 : f32 to vector<128x128xf32>
    %59 = arith.mulf %49, %58 : vector<128x128xf32>
    %c2_i32 = arith.constant 2 : i32
    %c0_29 = arith.constant 0 : index
    %60 = arith.index_cast %c2_i32 : i32 to index
    %c0_30 = arith.constant 0 : index
    %c0_31 = arith.constant 0 : index
    %61 = vector.load %arg5[%c0_29, %60, %c0_30, %c0_31] : memref<1x4x8x128xf32, #tpu.memory_space<vmem>>, vector<1x1x8x128xf32>
    %62 = vector.shape_cast %61 : vector<1x1x8x128xf32> to vector<8x128xf32>
    %c0_32 = arith.constant 0 : index
    %c0_33 = arith.constant 0 : index
    %63 = vector.load %arg7[%c0_32, %c0_33] : memref<8x128xf32, #tpu.memory_space<vmem>>, vector<8x128xf32>
    %cst_34 = arith.constant dense<0.000000e+00> : vector<8x128xf32>
    %64 = tpu.matmul %62, %57, %cst_34 {dimension_numbers = #tpu.dot_dimension_numbers<[1], [0], [0], [1], [0, 0, 1, 1], [], []>} : vector<8x128xf32>, vector<128x128xf32>, vector<8x128xf32> -> vector<8x128xf32>
    %65 = arith.addf %63, %64 : vector<8x128xf32>
    %c0_35 = arith.constant 0 : index
    %c0_36 = arith.constant 0 : index
    %66 = vector.load %arg7[%c0_35, %c0_36] : memref<8x128xf32, #tpu.memory_space<vmem>>, vector<8x128xf32>
    tpu.vector_store %arg7[%c0_35, %c0_36], %65 {strides = array<i32>} : memref<8x128xf32, #tpu.memory_space<vmem>>, vector<8x128xf32>,
    %67 = arith.mulf %57, %59 : vector<128x128xf32>
    %cst_37 = arith.constant 0.36787945 : f32
    %68 = vector.broadcast %cst_37 : f32 to vector<128x128xf32>
    %69 = arith.mulf %59, %68 : vector<128x128xf32>
    %c3_i32 = arith.constant 3 : i32
    %c0_38 = arith.constant 0 : index
    %70 = arith.index_cast %c3_i32 : i32 to index
    %c0_39 = arith.constant 0 : index
    %c0_40 = arith.constant 0 : index
    %71 = vector.load %arg5[%c0_38, %70, %c0_39, %c0_40] : memref<1x4x8x128xf32, #tpu.memory_space<vmem>>, vector<1x1x8x128xf32>
    %72 = vector.shape_cast %71 : vector<1x1x8x128xf32> to vector<8x128xf32>
    %c0_41 = arith.constant 0 : index
    %c0_42 = arith.constant 0 : index
    %73 = vector.load %arg7[%c0_41, %c0_42] : memref<8x128xf32, #tpu.memory_space<vmem>>, vector<8x128xf32>
    %cst_43 = arith.constant dense<0.000000e+00> : vector<8x128xf32>
    %74 = tpu.matmul %72, %67, %cst_43 {dimension_numbers = #tpu.dot_dimension_numbers<[1], [0], [0], [1], [0, 0, 1, 1], [], []>} : vector<8x128xf32>, vector<128x128xf32>, vector<8x128xf32> -> vector<8x128xf32>
    %75 = arith.addf %73, %74 : vector<8x128xf32>
    %c0_44 = arith.constant 0 : index
    %c0_45 = arith.constant 0 : index
    %76 = vector.load %arg7[%c0_44, %c0_45] : memref<8x128xf32, #tpu.memory_space<vmem>>, vector<8x128xf32>
    tpu.vector_store %arg7[%c0_44, %c0_45], %75 {strides = array<i32>} : memref<8x128xf32, #tpu.memory_space<vmem>>, vector<8x128xf32>,
    %77 = arith.mulf %67, %69 : vector<128x128xf32>
    %cst_46 = arith.constant 0.36787945 : f32
    %78 = vector.broadcast %cst_46 : f32 to vector<128x128xf32>
    %79 = arith.mulf %69, %78 : vector<128x128xf32>
    %c4_i32 = arith.constant 4 : i32
    %c0_i32_47 = arith.constant 0 : i32
    %80 = arith.cmpi eq, %arg2, %c0_i32_47 : i32
    %81 = arith.extui %80 : i1 to i32
    %c0_i32_48 = arith.constant 0 : i32
    %82 = arith.cmpi ne, %81, %c0_i32_48 : i32
    scf.if %82 {
      %c0_49 = arith.constant 0 : index
      %c0_50 = arith.constant 0 : index
      %83 = vector.load %arg7[%c0_49, %c0_50] : memref<8x128xf32, #tpu.memory_space<vmem>>, vector<8x128xf32>
      %cst_51 = arith.constant 1.000000e+00 : f32
      %84 = vector.broadcast %cst_51 : f32 to vector<8x128xf32>
      %85 = arith.mulf %83, %84 : vector<8x128xf32>
      %c0_52 = arith.constant 0 : index
      %c0_53 = arith.constant 0 : index
      %c0_54 = arith.constant 0 : index
      %86 = vector.load %arg6[%c0_52, %c0_53, %c0_54] : memref<1x8x128xf32, #tpu.memory_space<vmem>>, vector<1x8x128xf32>
      %87 = vector.shape_cast %86 : vector<1x8x128xf32> to vector<8x128xf32>
      %88 = vector.shape_cast %85 : vector<8x128xf32> to vector<1x8x128xf32>
      tpu.vector_store %arg6[%c0_52, %c0_53, %c0_54], %88 {strides = array<i32>} : memref<1x8x128xf32, #tpu.memory_space<vmem>>, vector<1x8x128xf32>,
    } else {
    }
    return
  }
  func.func @transform_0(%arg0: i32, %arg1: i32, %arg2: i32) -> (i32, i32, i32) {
    %c0_i32 = arith.constant 0 : i32
    %c0_i32_0 = arith.constant 0 : i32
    return %arg0, %c0_i32, %arg1 : i32, i32, i32
  }
  func.func @transform_1(%arg0: i32, %arg1: i32, %arg2: i32) -> (i32, i32, i32) {
    %c0_i32 = arith.constant 0 : i32
    %c0_i32_0 = arith.constant 0 : i32
    return %arg0, %arg2, %c0_i32 : i32, i32, i32
  }
  func.func @transform_2(%arg0: i32, %arg1: i32, %arg2: i32) -> (i32, i32, i32, i32) {
    %c0_i32 = arith.constant 0 : i32
    %c0_i32_0 = arith.constant 0 : i32
    %c0_i32_1 = arith.constant 0 : i32
    return %arg0, %c0_i32, %c0_i32_0, %arg2 : i32, i32, i32, i32
  }
  func.func @transform_3(%arg0: i32, %arg1: i32, %arg2: i32) -> (i32, i32, i32) {
    %c0_i32 = arith.constant 0 : i32
    %c0_i32_0 = arith.constant 0 : i32
    return %arg0, %c0_i32, %arg1 : i32, i32, i32
  }
}

</mosaic_0001>

<llo_original>
// kernel: tpu_custom_call.1
$region0: #{tpu_custom_call.1}
  #allocation0 [shape = 'u32[]', space=smem, size = 0x4, offset = 0x4, fixed_abs, tag = 'smem constant byte address 0x4 - core index']
  #allocation1 [shape = 'u32[144,128]{1,0:T(1,128)}', space=vmem, size = 0x12000, scoped, tag = 'internal scratch']
  #allocation2 [shape = 'f32[8,128]{1,0:T(8,128)}', space=vmem, size = 0x1000, scoped, tag = 'scratch operand']
  %s0 = inlined_call_operand.vmem [shape: f32[2,3,128], index: 0, kind: input, shape index: {}]
  %s1 = inlined_call_operand.vmem [shape: f32[2,128,3], index: 1, kind: input, shape index: {}]
  %s2 = inlined_call_operand.vmem [shape: f32[2,4,8,128], index: 2, kind: input, shape index: {}]
  %s3 = inlined_call_operand.hbm [shape: f32[2,8,128], index: 3, kind: output, shape index: {}]
  %s4 = sld [smem:[#allocation0]]
  $region53: #{tpu_custom_call.1} parent=0
    _
  %s6 = ssub.s32 1, %s4
  %s7 = scalar_select 0, %s6, %s4
  $region1: #{tpu_custom_call.1} parent=0
    #allocation3 [shape = 'u8[8192]{0}', space=vmem, size = 0x2000, scoped, tag = 'output window, operand 0']
    #allocation4 [shape = 's32[2]{0}', space=sflag, size = 0x8, scoped, tag = 'scoped memory for tpu_custom_call.1']
    %8 = vsyncpa [#allocation4], 0
    %s9 = scalar_lea.sflag [#allocation4], 1
    %10 = vsyncpa %s9, 0
    loop: start=0, step=1, limit=4
    $region2: #{tpu_custom_call.1} parent=1 // loop_pre_header
      _
    $region3: #{tpu_custom_call.1} parent=1 // loop_header
      %s12 = sphi 0, %s16
      %p13 = scmp.ge.s32.totalorder %s12, 4
      %s19 = sphi 0, %s38
      %s20 = sphi 0, %s34
      %s21 = sphi 0, %s30
      %s22 = sphi 0, %s19
      %s23 = sphi 0, %s20
      %s24 = sphi 0, %s21
      %s25 = sphi 0, %s22
      %s26 = sphi 0, %s23
      %s27 = sphi 0, %s24
      %s43 = sphi 0, %s45
      %s46 = sphi 0, %s43
      %s47 = sphi 0, %s46
      %s63 = sphi 0, %s47
      %s71 = sphi 0, %s73
      %s74 = sphi 0, %s71
      %s75 = sphi 0, %s74
      %s91 = sphi 0, %s75
      %s99 = sphi 0, %s101
      %s102 = sphi 0, %s99
      %s103 = sphi 0, %s102
      %s119 = sphi 0, %s103
      %s127 = sphi 0, %s129
      %s130 = sphi 0, %s127
      %s131 = sphi 0, %s130
      %s147 = sphi 0, %s131
    $region4: #{tpu_custom_call.1} parent=1 // loop_header_branch
      %15 = sbr.rel (%p13) target = $region8
    $region5: #{tpu_custom_call.1} parent=1 // loop_body
      %s17 = ssub.s32 %s12, 1
      %s18 = ssub.s32 %s12, 2
      %s28 = sadd.s32 1, %s21
      %p29 = scmp.ge.s32.totalorder %s28, 1
      %s30 = scalar_select %p29, 0, %s28
      %s31 = sadd.s32 1, %s20
      %s32 = scalar_select %p29, %s31, %s20
      %p33 = scmp.ge.s32.totalorder %s32, 1
      %s34 = scalar_select %p33, 0, %s32
      %s35 = sadd.s32 1, %s19
      %s36 = scalar_select %p33, %s35, %s19
      %p37 = scmp.ge.s32.totalorder %s36, 2
      %s38 = scalar_select %p37, 0, %s36
      %s39 = ssub.s32 %s19, %s38
      %s40 = ssub.s32 %s20, %s34
      %s41 = sor.u32 %s39, %s40
      %p42 = scmp.eq.s32.totalorder %s41, 0
      %s44 = sadd.s32 %s43, 1
      %s45 = scalar_select %p42, %s43, %s44
      %p48 = pneg %p42
      %p49 = scmp.eq.s32.totalorder %s12, 1
      %p50 = por %p48, %p49
      %p51 = scmp.ne.s32.totalorder %s43, %s46
      %p52 = scmp.eq.s32.totalorder %s12, 0
      %p53 = por %p51, %p52
      %p54 = scmp.ne.s32.totalorder %s43, %s46
      %p55 = scmp.eq.s32.totalorder %s17, 1
      %p56 = por %p54, %p55
      %p57 = scmp.ne.s32.totalorder %s46, %s47
      %p58 = scmp.eq.s32.totalorder %s17, 0
      %p59 = por %p57, %p58
      %p60 = scmp.ne.s32.totalorder %s46, %s47
      %p61 = scmp.eq.s32.totalorder %s18, 1
      %p62 = por %p60, %p61
      %p64 = scmp.ne.s32.totalorder %s47, %s63
      %p65 = scmp.eq.s32.totalorder %s18, 0
      %p66 = por %p64, %p65
      %s67 = ssub.s32 %s19, %s38
      %s68 = ssub.s32 %s21, %s30
      %s69 = sor.u32 %s67, %s68
      %p70 = scmp.eq.s32.totalorder %s69, 0
      %s72 = sadd.s32 %s71, 1
      %s73 = scalar_select %p70, %s71, %s72
      %p76 = pneg %p70
      %p77 = scmp.eq.s32.totalorder %s12, 1
      %p78 = por %p76, %p77
      %p79 = scmp.ne.s32.totalorder %s71, %s74
      %p80 = scmp.eq.s32.totalorder %s12, 0
      %p81 = por %p79, %p80
      %p82 = scmp.ne.s32.totalorder %s71, %s74
      %p83 = scmp.eq.s32.totalorder %s17, 1
      %p84 = por %p82, %p83
      %p85 = scmp.ne.s32.totalorder %s74, %s75
      %p86 = scmp.eq.s32.totalorder %s17, 0
      %p87 = por %p85, %p86
      %p88 = scmp.ne.s32.totalorder %s74, %s75
      %p89 = scmp.eq.s32.totalorder %s18, 1
      %p90 = por %p88, %p89
      %p92 = scmp.ne.s32.totalorder %s75, %s91
      %p93 = scmp.eq.s32.totalorder %s18, 0
      %p94 = por %p92, %p93
      %s95 = ssub.s32 %s19, %s38
      %s96 = ssub.s32 %s21, %s30
      %s97 = sor.u32 %s95, %s96
      %p98 = scmp.eq.s32.totalorder %s97, 0
      %s100 = sadd.s32 %s99, 1
      %s101 = scalar_select %p98, %s99, %s100
      %p104 = pneg %p98
      %p105 = scmp.eq.s32.totalorder %s12, 1
      %p106 = por %p104, %p105
      %p107 = scmp.ne.s32.totalorder %s99, %s102
      %p108 = scmp.eq.s32.totalorder %s12, 0
      %p109 = por %p107, %p108
      %p110 = scmp.ne.s32.totalorder %s99, %s102
      %p111 = scmp.eq.s32.totalorder %s17, 1
      %p112 = por %p110, %p111
      %p113 = scmp.ne.s32.totalorder %s102, %s103
      %p114 = scmp.eq.s32.totalorder %s17, 0
      %p115 = por %p113, %p114
      %p116 = scmp.ne.s32.totalorder %s102, %s103
      %p117 = scmp.eq.s32.totalorder %s18, 1
      %p118 = por %p116, %p117
      %p120 = scmp.ne.s32.totalorder %s103, %s119
      %p121 = scmp.eq.s32.totalorder %s18, 0
      %p122 = por %p120, %p121
      %s123 = ssub.s32 %s19, %s38
      %s124 = ssub.s32 %s20, %s34
      %s125 = sor.u32 %s123, %s124
      %p126 = scmp.eq.s32.totalorder %s125, 0
      %s128 = sadd.s32 %s127, 1
      %s129 = scalar_select %p126, %s127, %s128
      %p132 = pneg %p126
      %p133 = scmp.eq.s32.totalorder %s12, 1
      %p134 = por %p132, %p133
      %p135 = scmp.ne.s32.totalorder %s127, %s130
      %p136 = scmp.eq.s32.totalorder %s12, 0
      %p137 = por %p135, %p136
      %p138 = scmp.ne.s32.totalorder %s127, %s130
      %p139 = scmp.eq.s32.totalorder %s17, 1
      %p140 = por %p138, %p139
      %p141 = scmp.ne.s32.totalorder %s130, %s131
      %p142 = scmp.eq.s32.totalorder %s17, 0
      %p143 = por %p141, %p142
      %p144 = scmp.ne.s32.totalorder %s130, %s131
      %p145 = scmp.eq.s32.totalorder %s18, 1
      %p146 = por %p144, %p145
      %p148 = scmp.ne.s32.totalorder %s131, %s147
      %p149 = scmp.eq.s32.totalorder %s18, 0
      %p150 = por %p148, %p149
      %p151 = scmp.le.s32.totalorder 1, %s12
      %p152 = scmp.lt.s32.totalorder %s12, 3
      %p153 = pnand %p151, %p152
      %p154 = pneg %p153
      // Predicated region
      $region9: #{tpu_custom_call.1} parent=5 // pred_check
        _
      $region10: #{tpu_custom_call.1} parent=5 // pred_check_branch
        %156 = sbr.rel (%p153) target = $region12
      $region11: #{tpu_custom_call.1} parent=5 // pred_region
        %s157 = ssub.s32 %s12, 1
      $region12: #{tpu_custom_call.1} parent=5 // pred_fallthru
        _
      %p158 = scmp.lt.s32.totalorder %s12, 2
      // Predicated region
      $region13: #{tpu_custom_call.1} parent=5 // pred_check
        %p159 = pneg %p158
      $region14: #{tpu_custom_call.1} parent=5 // pred_check_branch
        %161 = sbr.rel (%p159) target = $region16
      $region15: #{tpu_custom_call.1} parent=5 // pred_region
        // Predicated region
        $region17: #{tpu_custom_call.1} parent=15 // pred_check
          %p162 = pneg %p53
        $region18: #{tpu_custom_call.1} parent=15 // pred_check_branch
          %164 = sbr.rel (%p162) target = $region20
        $region19: #{tpu_custom_call.1} parent=15 // pred_region
          %p165 = scmp.lt.s32.totalorder %s19, 1
          %s166 = scalar_select %p165, %s19, 1
          %p167 = scmp.lt.s32.totalorder %s20, 0
          %s168 = scalar_select %p167, %s20, 0
          %s169 = sadd.s32 %s168, %s166
          %s170 = smul.addr %s169, 4
          %s171 = scalar_lea.vmem %s0, %s170
        $region20: #{tpu_custom_call.1} parent=15 // pred_fallthru
          _
        // Predicated region
        $region21: #{tpu_custom_call.1} parent=15 // pred_check
          %p172 = pneg %p81
        $region22: #{tpu_custom_call.1} parent=15 // pred_check_branch
          %174 = sbr.rel (%p172) target = $region24
        $region23: #{tpu_custom_call.1} parent=15 // pred_region
          %s175 = smul.u32 16, %s21
          %p176 = scmp.lt.s32.totalorder %s19, 1
          %s177 = scalar_select %p176, %s19, 1
          %p178 = scmp.lt.s32.totalorder %s175, 15
          %s179 = scalar_select %p178, %s175, 15
          %s180 = smul.addr %s177, 16
          %s181 = sadd.s32 %s179, %s180
          %s182 = smul.addr %s181, 8
          %s183 = scalar_lea.vmem %s1, %s182
          %s184 = smul.u32 16, %s21
        $region24: #{tpu_custom_call.1} parent=15 // pred_fallthru
          _
        // Predicated region
        $region25: #{tpu_custom_call.1} parent=15 // pred_check
          %p185 = pneg %p109
        $region26: #{tpu_custom_call.1} parent=15 // pred_check_branch
          %187 = sbr.rel (%p185) target = $region28
        $region27: #{tpu_custom_call.1} parent=15 // pred_region
          %p188 = scmp.lt.s32.totalorder %s19, 1
          %s189 = scalar_select %p188, %s19, 1
          %p190 = scmp.lt.s32.totalorder %s21, 0
          %s191 = scalar_select %p190, %s21, 0
          %s192 = smul.addr %s189, 4
          %s193 = sadd.s32 %s191, %s192
          %s194 = smul.addr %s193, 8
          %s195 = scalar_lea.vmem %s2, %s194
        $region28: #{tpu_custom_call.1} parent=15 // pred_fallthru
          _
      $region16: #{tpu_custom_call.1} parent=5 // pred_fallthru
        _
      %p196 = scmp.le.s32.totalorder 1, %s12
      %p197 = scmp.lt.s32.totalorder %s12, 3
      %p198 = pnand %p196, %p197
      %p199 = pneg %p198
      // Predicated region
      $region29: #{tpu_custom_call.1} parent=5 // pred_check
        _
      $region30: #{tpu_custom_call.1} parent=5 // pred_check_branch
        %201 = sbr.rel (%p198) target = $region32
      $region31: #{tpu_custom_call.1} parent=5 // pred_region
        %s202 = ssub.s32 %s12, 1
        %p203 = scmp.lt.s32.totalorder %s22, 1
        %s204 = scalar_select %p203, %s22, 1
        %p205 = scmp.lt.s32.totalorder %s23, 0
        %s206 = scalar_select %p205, %s23, 0
        %s207 = sadd.s32 %s206, %s204
        %s208 = smul.addr %s207, 4
        %s209 = scalar_lea.vmem %s0, %s208
        %p210 = pneg %p59
        %p211 = pneg %p56
        %s212 = smul.u32 16, %s24
        %p213 = scmp.lt.s32.totalorder %s22, 1
        %s214 = scalar_select %p213, %s22, 1
        %p215 = scmp.lt.s32.totalorder %s212, 15
        %s216 = scalar_select %p215, %s212, 15
        %s217 = smul.addr %s214, 16
        %s218 = sadd.s32 %s216, %s217
        %s219 = smul.addr %s218, 8
        %s220 = scalar_lea.vmem %s1, %s219
        %p221 = pneg %p87
        %p222 = pneg %p84
        %p223 = scmp.lt.s32.totalorder %s22, 1
        %s224 = scalar_select %p223, %s22, 1
        %p225 = scmp.lt.s32.totalorder %s24, 0
        %s226 = scalar_select %p225, %s24, 0
        %s227 = smul.addr %s224, 4
        %s228 = sadd.s32 %s226, %s227
        %s229 = smul.addr %s228, 8
        %s230 = scalar_lea.vmem %s2, %s229
        %p231 = pneg %p115
        %p232 = pneg %p112
        %p233 = pneg %p143
        %p234 = pneg %p140
        %s235 = sand.u32 %s130, 1
        %s236 = scalar_lea.sflag [#allocation4], %s235
        %s237 = sand.u32 %s130, 1
        %s238 = smul.addr %s237, 8
        %s239 = scalar_lea.vmem [#allocation3], %s238
        %p240 = scmp.lt.s32.totalorder %s22, 1
        %s241 = scalar_select %p240, %s22, 1
        %p242 = scmp.lt.s32.totalorder %s23, 0
        %s243 = scalar_select %p242, %s23, 0
        %s244 = sadd.s32 %s243, %s241
        %s245 = smul.addr %s244, 4
        %s246 = scalar_lea.vmem %s0, %s245
        %s247 = smul.u32 16, %s24
        %p248 = scmp.lt.s32.totalorder %s22, 1
        %s249 = scalar_select %p248, %s22, 1
        %p250 = scmp.lt.s32.totalorder %s247, 15
        %s251 = scalar_select %p250, %s247, 15
        %s252 = smul.addr %s249, 16
        %s253 = sadd.s32 %s251, %s252
        %s254 = smul.addr %s253, 8
        %s255 = scalar_lea.vmem %s1, %s254
        %s256 = smul.u32 16, %s24
        %p257 = scmp.lt.s32.totalorder %s22, 1
        %s258 = scalar_select %p257, %s22, 1
        %p259 = scmp.lt.s32.totalorder %s24, 0
        %s260 = scalar_select %p259, %s24, 0
        %s261 = smul.addr %s258, 4
        %s262 = sadd.s32 %s260, %s261
        %s263 = smul.addr %s262, 8
        %s264 = scalar_lea.vmem %s2, %s263
        %p265 = scmp.eq.s32.totalorder %s24, 0
        // Predicated region
        $region33: #{tpu_custom_call.1} parent=31 // pred_check
          %p266 = pneg %p265
        $region34: #{tpu_custom_call.1} parent=31 // pred_check_branch
          %268 = sbr.rel (%p266) target = $region36
        $region35: #{tpu_custom_call.1} parent=31 // pred_region
          %269 = vst [vmem:[#allocation2] sm:$0xff] 0.0
        $region36: #{tpu_custom_call.1} parent=31 // pred_fallthru
          _
        %v270 = vld [vmem:[%s246] sm:$0x7]
        %v271 = vld [vmem:[%s255] sm:$0xff]
        %v272 = vld [vmem:[%s255 + $0x8] sm:$0xff]
        %v273 = vld [vmem:[%s255 + $0x10] sm:$0xff]
        %v274 = vld [vmem:[%s255 + $0x18] sm:$0xff]
        %v275 = vld [vmem:[%s255 + $0x20] sm:$0xff]
        %v276 = vld [vmem:[%s255 + $0x28] sm:$0xff]
        %v277 = vld [vmem:[%s255 + $0x30] sm:$0xff]
        %v278 = vld [vmem:[%s255 + $0x38] sm:$0xff]
        %v279 = vld [vmem:[%s255 + $0x40] sm:$0xff]
        %v280 = vld [vmem:[%s255 + $0x48] sm:$0xff]
        %v281 = vld [vmem:[%s255 + $0x50] sm:$0xff]
        %v282 = vld [vmem:[%s255 + $0x58] sm:$0xff]
        %v283 = vld [vmem:[%s255 + $0x60] sm:$0xff]
        %v284 = vld [vmem:[%s255 + $0x68] sm:$0xff]
        %v285 = vld [vmem:[%s255 + $0x70] sm:$0xff]
        %v286 = vld [vmem:[%s255 + $0x78] sm:$0xff]
        %288 = vset.pattern.permute.xlu0 0
        %289 = vperm.xlu0 %288, %v271
        %v290 = vpop.permute.xlu0 %289
        %293 = vset.pattern.permute.xlu0 0
        %294 = vperm.xlu0 %293, %v272
        %v295 = vpop.permute.xlu0 %294
        %298 = vset.pattern.permute.xlu0 0
        %299 = vperm.xlu0 %298, %v273
        %v300 = vpop.permute.xlu0 %299
        %303 = vset.pattern.permute.xlu0 0
        %304 = vperm.xlu0 %303, %v274
        %v305 = vpop.permute.xlu0 %304
        %308 = vset.pattern.permute.xlu0 0
        %309 = vperm.xlu0 %308, %v275
        %v310 = vpop.permute.xlu0 %309
        %313 = vset.pattern.permute.xlu0 0
        %314 = vperm.xlu0 %313, %v276
        %v315 = vpop.permute.xlu0 %314
        %318 = vset.pattern.permute.xlu0 0
        %319 = vperm.xlu0 %318, %v277
        %v320 = vpop.permute.xlu0 %319
        %323 = vset.pattern.permute.xlu0 0
        %324 = vperm.xlu0 %323, %v278
        %v325 = vpop.permute.xlu0 %324
        %328 = vset.pattern.permute.xlu0 0
        %329 = vperm.xlu0 %328, %v279
        %v330 = vpop.permute.xlu0 %329
        %333 = vset.pattern.permute.xlu0 0
        %334 = vperm.xlu0 %333, %v280
        %v335 = vpop.permute.xlu0 %334
        %338 = vset.pattern.permute.xlu0 0
        %339 = vperm.xlu0 %338, %v281
        %v340 = vpop.permute.xlu0 %339
        %343 = vset.pattern.permute.xlu0 0
        %344 = vperm.xlu0 %343, %v282
        %v345 = vpop.permute.xlu0 %344
        %348 = vset.pattern.permute.xlu0 0
        %349 = vperm.xlu0 %348, %v283
        %v350 = vpop.permute.xlu0 %349
        %353 = vset.pattern.permute.xlu0 0
        %354 = vperm.xlu0 %353, %v284
        %v355 = vpop.permute.xlu0 %354
        %358 = vset.pattern.permute.xlu0 0
        %359 = vperm.xlu0 %358, %v285
        %v360 = vpop.permute.xlu0 %359
        %363 = vset.pattern.permute.xlu0 0
        %364 = vperm.xlu0 %363, %v286
        %v365 = vpop.permute.xlu0 %364
        %v367 = vlaneseq
        %v368 = vshrl.u32 %v367, 7
        %v369 = vsub.s32 0, %v368
        %v370 = vrot.slane %v270, %v369
        %v371 = vsub.f32 %v290, %v370
        %v372 = vsub.f32 %v295, %v370
        %v373 = vsub.f32 %v300, %v370
        %v374 = vsub.f32 %v305, %v370
        %v375 = vsub.f32 %v310, %v370
        %v376 = vsub.f32 %v315, %v370
        %v377 = vsub.f32 %v320, %v370
        %v378 = vsub.f32 %v325, %v370
        %v379 = vsub.f32 %v330, %v370
        %v380 = vsub.f32 %v335, %v370
        %v381 = vsub.f32 %v340, %v370
        %v382 = vsub.f32 %v345, %v370
        %v383 = vsub.f32 %v350, %v370
        %v384 = vsub.f32 %v355, %v370
        %v385 = vsub.f32 %v360, %v370
        %v386 = vsub.f32 %v365, %v370
        %v387 = vmul.f32 %v371, %v371
        %v388 = vmul.f32 %v372, %v372
        %v389 = vmul.f32 %v373, %v373
        %v390 = vmul.f32 %v374, %v374
        %v391 = vmul.f32 %v375, %v375
        %v392 = vmul.f32 %v376, %v376
        %v393 = vmul.f32 %v377, %v377
        %v394 = vmul.f32 %v378, %v378
        %v395 = vmul.f32 %v379, %v379
        %v396 = vmul.f32 %v380, %v380
        %v397 = vmul.f32 %v381, %v381
        %v398 = vmul.f32 %v382, %v382
        %v399 = vmul.f32 %v383, %v383
        %v400 = vmul.f32 %v384, %v384
        %v401 = vmul.f32 %v385, %v385
        %v402 = vmul.f32 %v386, %v386
        %v403 = vadd.f32 %v387, 0.0
        %v404 = vadd.f32 %v388, 0.0
        %v405 = vadd.f32 %v389, 0.0
        %v406 = vadd.f32 %v390, 0.0
        %v407 = vadd.f32 %v391, 0.0
        %v408 = vadd.f32 %v392, 0.0
        %v409 = vadd.f32 %v393, 0.0
        %v410 = vadd.f32 %v394, 0.0
        %v411 = vadd.f32 %v395, 0.0
        %v412 = vadd.f32 %v396, 0.0
        %v413 = vadd.f32 %v397, 0.0
        %v414 = vadd.f32 %v398, 0.0
        %v415 = vadd.f32 %v399, 0.0
        %v416 = vadd.f32 %v400, 0.0
        %v417 = vadd.f32 %v401, 0.0
        %v418 = vadd.f32 %v402, 0.0
        %419 = vset.pattern.permute.xlu0 1
        %420 = vperm.xlu0 %419, %v271
        %v421 = vpop.permute.xlu0 %420
        %423 = vset.pattern.permute.xlu0 1
        %424 = vperm.xlu0 %423, %v272
        %v425 = vpop.permute.xlu0 %424
        %427 = vset.pattern.permute.xlu0 1
        %428 = vperm.xlu0 %427, %v273
        %v429 = vpop.permute.xlu0 %428
        %431 = vset.pattern.permute.xlu0 1
        %432 = vperm.xlu0 %431, %v274
        %v433 = vpop.permute.xlu0 %432
        %435 = vset.pattern.permute.xlu0 1
        %436 = vperm.xlu0 %435, %v275
        %v437 = vpop.permute.xlu0 %436
        %439 = vset.pattern.permute.xlu0 1
        %440 = vperm.xlu0 %439, %v276
        %v441 = vpop.permute.xlu0 %440
        %443 = vset.pattern.permute.xlu0 1
        %444 = vperm.xlu0 %443, %v277
        %v445 = vpop.permute.xlu0 %444
        %447 = vset.pattern.permute.xlu0 1
        %448 = vperm.xlu0 %447, %v278
        %v449 = vpop.permute.xlu0 %448
        %451 = vset.pattern.permute.xlu0 1
        %452 = vperm.xlu0 %451, %v279
        %v453 = vpop.permute.xlu0 %452
        %455 = vset.pattern.permute.xlu0 1
        %456 = vperm.xlu0 %455, %v280
        %v457 = vpop.permute.xlu0 %456
        %459 = vset.pattern.permute.xlu0 1
        %460 = vperm.xlu0 %459, %v281
        %v461 = vpop.permute.xlu0 %460
        %463 = vset.pattern.permute.xlu0 1
        %464 = vperm.xlu0 %463, %v282
        %v465 = vpop.permute.xlu0 %464
        %467 = vset.pattern.permute.xlu0 1
        %468 = vperm.xlu0 %467, %v283
        %v469 = vpop.permute.xlu0 %468
        %471 = vset.pattern.permute.xlu0 1
        %472 = vperm.xlu0 %471, %v284
        %v473 = vpop.permute.xlu0 %472
        %475 = vset.pattern.permute.xlu0 1
        %476 = vperm.xlu0 %475, %v285
        %v477 = vpop.permute.xlu0 %476
        %479 = vset.pattern.permute.xlu0 1
        %480 = vperm.xlu0 %479, %v286
        %v481 = vpop.permute.xlu0 %480
        %v483 = vlaneseq
        %v484 = vshrl.u32 %v483, 7
        %v485 = vsub.s32 1, %v484
        %v486 = vrot.slane %v270, %v485
        %v487 = vsub.f32 %v421, %v486
        %v488 = vsub.f32 %v425, %v486
        %v489 = vsub.f32 %v429, %v486
        %v490 = vsub.f32 %v433, %v486
        %v491 = vsub.f32 %v437, %v486
        %v492 = vsub.f32 %v441, %v486
        %v493 = vsub.f32 %v445, %v486
        %v494 = vsub.f32 %v449, %v486
        %v495 = vsub.f32 %v453, %v486
        %v496 = vsub.f32 %v457, %v486
        %v497 = vsub.f32 %v461, %v486
        %v498 = vsub.f32 %v465, %v486
        %v499 = vsub.f32 %v469, %v486
        %v500 = vsub.f32 %v473, %v486
        %v501 = vsub.f32 %v477, %v486
        %v502 = vsub.f32 %v481, %v486
        %v503 = vmul.f32 %v487, %v487
        %v504 = vmul.f32 %v488, %v488
        %v505 = vmul.f32 %v489, %v489
        %v506 = vmul.f32 %v490, %v490
        %v507 = vmul.f32 %v491, %v491
        %v508 = vmul.f32 %v492, %v492
        %v509 = vmul.f32 %v493, %v493
        %v510 = vmul.f32 %v494, %v494
        %v511 = vmul.f32 %v495, %v495
        %v512 = vmul.f32 %v496, %v496
        %v513 = vmul.f32 %v497, %v497
        %v514 = vmul.f32 %v498, %v498
        %v515 = vmul.f32 %v499, %v499
        %v516 = vmul.f32 %v500, %v500
        %v517 = vmul.f32 %v501, %v501
        %v518 = vmul.f32 %v502, %v502
        %v519 = vadd.f32 %v403, %v503
        %v520 = vadd.f32 %v404, %v504
        %v521 = vadd.f32 %v405, %v505
        %v522 = vadd.f32 %v406, %v506
        %v523 = vadd.f32 %v407, %v507
        %v524 = vadd.f32 %v408, %v508
        %v525 = vadd.f32 %v409, %v509
        %v526 = vadd.f32 %v410, %v510
        %v527 = vadd.f32 %v411, %v511
        %v528 = vadd.f32 %v412, %v512
        %v529 = vadd.f32 %v413, %v513
        %v530 = vadd.f32 %v414, %v514
        %v531 = vadd.f32 %v415, %v515
        %v532 = vadd.f32 %v416, %v516
        %v533 = vadd.f32 %v417, %v517
        %v534 = vadd.f32 %v418, %v518
        %535 = vset.pattern.permute.xlu0 2
        %536 = vperm.xlu0 %535, %v271
        %v537 = vpop.permute.xlu0 %536
        %539 = vset.pattern.permute.xlu0 2
        %540 = vperm.xlu0 %539, %v272
        %v541 = vpop.permute.xlu0 %540
        %543 = vset.pattern.permute.xlu0 2
        %544 = vperm.xlu0 %543, %v273
        %v545 = vpop.permute.xlu0 %544
        %547 = vset.pattern.permute.xlu0 2
        %548 = vperm.xlu0 %547, %v274
        %v549 = vpop.permute.xlu0 %548
        %551 = vset.pattern.permute.xlu0 2
        %552 = vperm.xlu0 %551, %v275
        %v553 = vpop.permute.xlu0 %552
        %555 = vset.pattern.permute.xlu0 2
        %556 = vperm.xlu0 %555, %v276
        %v557 = vpop.permute.xlu0 %556
        %559 = vset.pattern.permute.xlu0 2
        %560 = vperm.xlu0 %559, %v277
        %v561 = vpop.permute.xlu0 %560
        %563 = vset.pattern.permute.xlu0 2
        %564 = vperm.xlu0 %563, %v278
        %v565 = vpop.permute.xlu0 %564
        %567 = vset.pattern.permute.xlu0 2
        %568 = vperm.xlu0 %567, %v279
        %v569 = vpop.permute.xlu0 %568
        %571 = vset.pattern.permute.xlu0 2
        %572 = vperm.xlu0 %571, %v280
        %v573 = vpop.permute.xlu0 %572
        %575 = vset.pattern.permute.xlu0 2
        %576 = vperm.xlu0 %575, %v281
        %v577 = vpop.permute.xlu0 %576
        %579 = vset.pattern.permute.xlu0 2
        %580 = vperm.xlu0 %579, %v282
        %v581 = vpop.permute.xlu0 %580
        %583 = vset.pattern.permute.xlu0 2
        %584 = vperm.xlu0 %583, %v283
        %v585 = vpop.permute.xlu0 %584
        %587 = vset.pattern.permute.xlu0 2
        %588 = vperm.xlu0 %587, %v284
        %v589 = vpop.permute.xlu0 %588
        %591 = vset.pattern.permute.xlu0 2
        %592 = vperm.xlu0 %591, %v285
        %v593 = vpop.permute.xlu0 %592
        %595 = vset.pattern.permute.xlu0 2
        %596 = vperm.xlu0 %595, %v286
        %v597 = vpop.permute.xlu0 %596
        %v599 = vlaneseq
        %v600 = vshrl.u32 %v599, 7
        %v601 = vsub.s32 2, %v600
        %v602 = vrot.slane %v270, %v601
        %v603 = vsub.f32 %v537, %v602
        %v604 = vsub.f32 %v541, %v602
        %v605 = vsub.f32 %v545, %v602
        %v606 = vsub.f32 %v549, %v602
        %v607 = vsub.f32 %v553, %v602
        %v608 = vsub.f32 %v557, %v602
        %v609 = vsub.f32 %v561, %v602
        %v610 = vsub.f32 %v565, %v602
        %v611 = vsub.f32 %v569, %v602
        %v612 = vsub.f32 %v573, %v602
        %v613 = vsub.f32 %v577, %v602
        %v614 = vsub.f32 %v581, %v602
        %v615 = vsub.f32 %v585, %v602
        %v616 = vsub.f32 %v589, %v602
        %v617 = vsub.f32 %v593, %v602
        %v618 = vsub.f32 %v597, %v602
        %v619 = vmul.f32 %v603, %v603
        %v620 = vmul.f32 %v604, %v604
        %v621 = vmul.f32 %v605, %v605
        %v622 = vmul.f32 %v606, %v606
        %v623 = vmul.f32 %v607, %v607
        %v624 = vmul.f32 %v608, %v608
        %v625 = vmul.f32 %v609, %v609
        %v626 = vmul.f32 %v610, %v610
        %v627 = vmul.f32 %v611, %v611
        %v628 = vmul.f32 %v612, %v612
        %v629 = vmul.f32 %v613, %v613
        %v630 = vmul.f32 %v614, %v614
        %v631 = vmul.f32 %v615, %v615
        %v632 = vmul.f32 %v616, %v616
        %v633 = vmul.f32 %v617, %v617
        %v634 = vmul.f32 %v618, %v618
        %v635 = vadd.f32 %v519, %v619
        %v636 = vadd.f32 %v520, %v620
        %v637 = vadd.f32 %v521, %v621
        %v638 = vadd.f32 %v522, %v622
        %v639 = vadd.f32 %v523, %v623
        %v640 = vadd.f32 %v524, %v624
        %v641 = vadd.f32 %v525, %v625
        %v642 = vadd.f32 %v526, %v626
        %v643 = vadd.f32 %v527, %v627
        %v644 = vadd.f32 %v528, %v628
        %v645 = vadd.f32 %v529, %v629
        %v646 = vadd.f32 %v530, %v630
        %v647 = vadd.f32 %v531, %v631
        %v648 = vadd.f32 %v532, %v632
        %v649 = vadd.f32 %v533, %v633
        %v650 = vadd.f32 %v534, %v634
        %v651 = vrsqrt.pop %v635
        %v652 = vmul.f32 %v635, %v651
        %vm653 = vcmp.eq.f32.partialorder %v635, inf
        %v654 = vsel %vm653, %v635, %v652
        %vm655 = vcmp.eq.f32.partialorder %v635, 0.0
        %v656 = vand.u32 %v635, 2147483648
        %v657 = vsel %vm655, %v656, %v654
        %v658 = vrsqrt.pop %v636
        %v659 = vmul.f32 %v636, %v658
        %vm660 = vcmp.eq.f32.partialorder %v636, inf
        %v661 = vsel %vm660, %v636, %v659
        %vm662 = vcmp.eq.f32.partialorder %v636, 0.0
        %v663 = vand.u32 %v636, 2147483648
        %v664 = vsel %vm662, %v663, %v661
        %v665 = vrsqrt.pop %v637
        %v666 = vmul.f32 %v637, %v665
        %vm667 = vcmp.eq.f32.partialorder %v637, inf
        %v668 = vsel %vm667, %v637, %v666
        %vm669 = vcmp.eq.f32.partialorder %v637, 0.0
        %v670 = vand.u32 %v637, 2147483648
        %v671 = vsel %vm669, %v670, %v668
        %v672 = vrsqrt.pop %v638
        %v673 = vmul.f32 %v638, %v672
        %vm674 = vcmp.eq.f32.partialorder %v638, inf
        %v675 = vsel %vm674, %v638, %v673
        %vm676 = vcmp.eq.f32.partialorder %v638, 0.0
        %v677 = vand.u32 %v638, 2147483648
        %v678 = vsel %vm676, %v677, %v675
        %v679 = vrsqrt.pop %v639
        %v680 = vmul.f32 %v639, %v679
        %vm681 = vcmp.eq.f32.partialorder %v639, inf
        %v682 = vsel %vm681, %v639, %v680
        %vm683 = vcmp.eq.f32.partialorder %v639, 0.0
        %v684 = vand.u32 %v639, 2147483648
        %v685 = vsel %vm683, %v684, %v682
        %v686 = vrsqrt.pop %v640
        %v687 = vmul.f32 %v640, %v686
        %vm688 = vcmp.eq.f32.partialorder %v640, inf
        %v689 = vsel %vm688, %v640, %v687
        %vm690 = vcmp.eq.f32.partialorder %v640, 0.0
        %v691 = vand.u32 %v640, 2147483648
        %v692 = vsel %vm690, %v691, %v689
        %v693 = vrsqrt.pop %v641
        %v694 = vmul.f32 %v641, %v693
        %vm695 = vcmp.eq.f32.partialorder %v641, inf
        %v696 = vsel %vm695, %v641, %v694
        %vm697 = vcmp.eq.f32.partialorder %v641, 0.0
        %v698 = vand.u32 %v641, 2147483648
        %v699 = vsel %vm697, %v698, %v696
        %v700 = vrsqrt.pop %v642
        %v701 = vmul.f32 %v642, %v700
        %vm702 = vcmp.eq.f32.partialorder %v642, inf
        %v703 = vsel %vm702, %v642, %v701
        %vm704 = vcmp.eq.f32.partialorder %v642, 0.0
        %v705 = vand.u32 %v642, 2147483648
        %v706 = vsel %vm704, %v705, %v703
        %v707 = vrsqrt.pop %v643
        %v708 = vmul.f32 %v643, %v707
        %vm709 = vcmp.eq.f32.partialorder %v643, inf
        %v710 = vsel %vm709, %v643, %v708
        %vm711 = vcmp.eq.f32.partialorder %v643, 0.0
        %v712 = vand.u32 %v643, 2147483648
        %v713 = vsel %vm711, %v712, %v710
        %v714 = vrsqrt.pop %v644
        %v715 = vmul.f32 %v644, %v714
        %vm716 = vcmp.eq.f32.partialorder %v644, inf
        %v717 = vsel %vm716, %v644, %v715
        %vm718 = vcmp.eq.f32.partialorder %v644, 0.0
        %v719 = vand.u32 %v644, 2147483648
        %v720 = vsel %vm718, %v719, %v717
        %v721 = vrsqrt.pop %v645
        %v722 = vmul.f32 %v645, %v721
        %vm723 = vcmp.eq.f32.partialorder %v645, inf
        %v724 = vsel %vm723, %v645, %v722
        %vm725 = vcmp.eq.f32.partialorder %v645, 0.0
        %v726 = vand.u32 %v645, 2147483648
        %v727 = vsel %vm725, %v726, %v724
        %v728 = vrsqrt.pop %v646
        %v729 = vmul.f32 %v646, %v728
        %vm730 = vcmp.eq.f32.partialorder %v646, inf
        %v731 = vsel %vm730, %v646, %v729
        %vm732 = vcmp.eq.f32.partialorder %v646, 0.0
        %v733 = vand.u32 %v646, 2147483648
        %v734 = vsel %vm732, %v733, %v731
        %v735 = vrsqrt.pop %v647
        %v736 = vmul.f32 %v647, %v735
        %vm737 = vcmp.eq.f32.partialorder %v647, inf
        %v738 = vsel %vm737, %v647, %v736
        %vm739 = vcmp.eq.f32.partialorder %v647, 0.0
        %v740 = vand.u32 %v647, 2147483648
        %v741 = vsel %vm739, %v740, %v738
        %v742 = vrsqrt.pop %v648
        %v743 = vmul.f32 %v648, %v742
        %vm744 = vcmp.eq.f32.partialorder %v648, inf
        %v745 = vsel %vm744, %v648, %v743
        %vm746 = vcmp.eq.f32.partialorder %v648, 0.0
        %v747 = vand.u32 %v648, 2147483648
        %v748 = vsel %vm746, %v747, %v745
        %v749 = vrsqrt.pop %v649
        %v750 = vmul.f32 %v649, %v749
        %vm751 = vcmp.eq.f32.partialorder %v649, inf
        %v752 = vsel %vm751, %v649, %v750
        %vm753 = vcmp.eq.f32.partialorder %v649, 0.0
        %v754 = vand.u32 %v649, 2147483648
        %v755 = vsel %vm753, %v754, %v752
        %v756 = vrsqrt.pop %v650
        %v757 = vmul.f32 %v650, %v756
        %vm758 = vcmp.eq.f32.partialorder %v650, inf
        %v759 = vsel %vm758, %v650, %v757
        %vm760 = vcmp.eq.f32.partialorder %v650, 0.0
        %v761 = vand.u32 %v650, 2147483648
        %v762 = vsel %vm760, %v761, %v759
        %v763 = vmin.f32 %v657, 7.3333335
        %v764 = vmin.f32 %v664, 7.3333335
        %v765 = vmin.f32 %v671, 7.3333335
        %v766 = vmin.f32 %v678, 7.3333335
        %v767 = vmin.f32 %v685, 7.3333335
        %v768 = vmin.f32 %v692, 7.3333335
        %v769 = vmin.f32 %v699, 7.3333335
        %v770 = vmin.f32 %v706, 7.3333335
        %v771 = vmin.f32 %v713, 7.3333335
        %v772 = vmin.f32 %v720, 7.3333335
        %v773 = vmin.f32 %v727, 7.3333335
        %v774 = vmin.f32 %v734, 7.3333335
        %v775 = vmin.f32 %v741, 7.3333335
        %v776 = vmin.f32 %v748, 7.3333335
        %v777 = vmin.f32 %v755, 7.3333335
        %v778 = vmin.f32 %v762, 7.3333335
        %v779 = vmul.f32 %v635, -1.125
        %v780 = vmul.f32 %v636, -1.125
        %v781 = vmul.f32 %v637, -1.125
        %v782 = vmul.f32 %v638, -1.125
        %v783 = vmul.f32 %v639, -1.125
        %v784 = vmul.f32 %v640, -1.125
        %v785 = vmul.f32 %v641, -1.125
        %v786 = vmul.f32 %v642, -1.125
        %v787 = vmul.f32 %v643, -1.125
        %v788 = vmul.f32 %v644, -1.125
        %v789 = vmul.f32 %v645, -1.125
        %v790 = vmul.f32 %v646, -1.125
        %v791 = vmul.f32 %v647, -1.125
        %v792 = vmul.f32 %v648, -1.125
        %v793 = vmul.f32 %v649, -1.125
        %v794 = vmul.f32 %v650, -1.125
        %v795 = vmul.f32 %v779, 1.442695
        %v796 = vpow.pop %v795
        %v797 = vmul.f32 %v780, 1.442695
        %v798 = vpow.pop %v797
        %v799 = vmul.f32 %v781, 1.442695
        %v800 = vpow.pop %v799
        %v801 = vmul.f32 %v782, 1.442695
        %v802 = vpow.pop %v801
        %v803 = vmul.f32 %v783, 1.442695
        %v804 = vpow.pop %v803
        %v805 = vmul.f32 %v784, 1.442695
        %v806 = vpow.pop %v805
        %v807 = vmul.f32 %v785, 1.442695
        %v808 = vpow.pop %v807
        %v809 = vmul.f32 %v786, 1.442695
        %v810 = vpow.pop %v809
        %v811 = vmul.f32 %v787, 1.442695
        %v812 = vpow.pop %v811
        %v813 = vmul.f32 %v788, 1.442695
        %v814 = vpow.pop %v813
        %v815 = vmul.f32 %v789, 1.442695
        %v816 = vpow.pop %v815
        %v817 = vmul.f32 %v790, 1.442695
        %v818 = vpow.pop %v817
        %v819 = vmul.f32 %v791, 1.442695
        %v820 = vpow.pop %v819
        %v821 = vmul.f32 %v792, 1.442695
        %v822 = vpow.pop %v821
        %v823 = vmul.f32 %v793, 1.442695
        %v824 = vpow.pop %v823
        %v825 = vmul.f32 %v794, 1.442695
        %v826 = vpow.pop %v825
        %v827 = vmul.f32 %v763, 1.5
        %v828 = vmul.f32 %v764, 1.5
        %v829 = vmul.f32 %v765, 1.5
        %v830 = vmul.f32 %v766, 1.5
        %v831 = vmul.f32 %v767, 1.5
        %v832 = vmul.f32 %v768, 1.5
        %v833 = vmul.f32 %v769, 1.5
        %v834 = vmul.f32 %v770, 1.5
        %v835 = vmul.f32 %v771, 1.5
        %v836 = vmul.f32 %v772, 1.5
        %v837 = vmul.f32 %v773, 1.5
        %v838 = vmul.f32 %v774, 1.5
        %v839 = vmul.f32 %v775, 1.5
        %v840 = vmul.f32 %v776, 1.5
        %v841 = vmul.f32 %v777, 1.5
        %v842 = vmul.f32 %v778, 1.5
        %v843 = vmul.f32 %v827, 1.442695
        %v844 = vpow.pop %v843
        %v845 = vmul.f32 %v828, 1.442695
        %v846 = vpow.pop %v845
        %v847 = vmul.f32 %v829, 1.442695
        %v848 = vpow.pop %v847
        %v849 = vmul.f32 %v830, 1.442695
        %v850 = vpow.pop %v849
        %v851 = vmul.f32 %v831, 1.442695
        %v852 = vpow.pop %v851
        %v853 = vmul.f32 %v832, 1.442695
        %v854 = vpow.pop %v853
        %v855 = vmul.f32 %v833, 1.442695
        %v856 = vpow.pop %v855
        %v857 = vmul.f32 %v834, 1.442695
        %v858 = vpow.pop %v857
        %v859 = vmul.f32 %v835, 1.442695
        %v860 = vpow.pop %v859
        %v861 = vmul.f32 %v836, 1.442695
        %v862 = vpow.pop %v861
        %v863 = vmul.f32 %v837, 1.442695
        %v864 = vpow.pop %v863
        %v865 = vmul.f32 %v838, 1.442695
        %v866 = vpow.pop %v865
        %v867 = vmul.f32 %v839, 1.442695
        %v868 = vpow.pop %v867
        %v869 = vmul.f32 %v840, 1.442695
        %v870 = vpow.pop %v869
        %v871 = vmul.f32 %v841, 1.442695
        %v872 = vpow.pop %v871
        %v873 = vmul.f32 %v842, 1.442695
        %v874 = vpow.pop %v873
        %v875 = vmul.f32 %v844, 0.60653067
        %v876 = vmul.f32 %v846, 0.60653067
        %v877 = vmul.f32 %v848, 0.60653067
        %v878 = vmul.f32 %v850, 0.60653067
        %v879 = vmul.f32 %v852, 0.60653067
        %v880 = vmul.f32 %v854, 0.60653067
        %v881 = vmul.f32 %v856, 0.60653067
        %v882 = vmul.f32 %v858, 0.60653067
        %v883 = vmul.f32 %v860, 0.60653067
        %v884 = vmul.f32 %v862, 0.60653067
        %v885 = vmul.f32 %v864, 0.60653067
        %v886 = vmul.f32 %v866, 0.60653067
        %v887 = vmul.f32 %v868, 0.60653067
        %v888 = vmul.f32 %v870, 0.60653067
        %v889 = vmul.f32 %v872, 0.60653067
        %v890 = vmul.f32 %v874, 0.60653067
        %v891 = vld [vmem:[%s264] sm:$0xff]
        %v892 = vld [vmem:[#allocation2] sm:$0xff]
        %893 = vmatprep.subr.mxu0 0.0
        %894 = vmatpush1.msra.mxu0 %v796
        %895 = vmatprep.subr.mxu0 0.0
        %896 = vmatpush1.msra.mxu0 %v798
        %897 = vmatprep.subr.mxu0 0.0
        %898 = vmatpush1.msra.mxu0 %v800
        %899 = vmatprep.subr.mxu0 0.0
        %900 = vmatpush1.msra.mxu0 %v802
        %901 = vmatprep.subr.mxu0 0.0
        %902 = vmatpush1.msra.mxu0 %v804
        %903 = vmatprep.subr.mxu0 0.0
        %904 = vmatpush1.msra.mxu0 %v806
        %905 = vmatprep.subr.mxu0 0.0
        %906 = vmatpush1.msra.mxu0 %v808
        %907 = vmatprep.subr.mxu0 0.0
        %908 = vmatpush1.msra.mxu0 %v810
        %909 = vmatprep.subr.mxu0 0.0
        %910 = vmatpush1.msra.mxu0 %v812
        %911 = vmatprep.subr.mxu0 0.0
        %912 = vmatpush1.msra.mxu0 %v814
        %913 = vmatprep.subr.mxu0 0.0
        %914 = vmatpush1.msra.mxu0 %v816
        %915 = vmatprep.subr.mxu0 0.0
        %916 = vmatpush1.msra.mxu0 %v818
        %917 = vmatprep.subr.mxu0 0.0
        %918 = vmatpush1.msra.mxu0 %v820
        %919 = vmatprep.subr.mxu0 0.0
        %920 = vmatpush1.msra.mxu0 %v822
        %921 = vmatprep.subr.mxu0 0.0
        %922 = vmatpush1.msra.mxu0 %v824
        %923 = vmatprep.subr.mxu0 0.0
        %924 = vmatpush1.msra.mxu0 %v826
        %925 = vmatprep.subr.mxu0 0.0
        %926 = vmatpush1.msra.mxu0 0.0
        %927 = vmatprep.subr.mxu0 0.0
        %928 = vmatpush1.msra.mxu0 0.0
        %929 = vmatprep.subr.mxu0 0.0
        %930 = vmatpush1.msra.mxu0 0.0
        %931 = vmatprep.subr.mxu0 0.0
        %932 = vmatpush1.msra.mxu0 0.0
        %933 = vmatprep.subr.mxu0 0.0
        %934 = vmatpush1.msra.mxu0 0.0
        %935 = vmatprep.subr.mxu0 0.0
        %936 = vmatpush1.msra.mxu0 0.0
        %937 = vmatprep.subr.mxu0 0.0
        %938 = vmatpush1.msra.mxu0 0.0
        %939 = vmatprep.subr.mxu0 0.0
        %940 = vmatpush1.msra.mxu0 0.0
        %941 = vmatprep.subr.mxu0 0.0
        %942 = vmatpush1.msra.mxu0 0.0
        %943 = vmatprep.subr.mxu0 0.0
        %944 = vmatpush1.msra.mxu0 0.0
        %945 = vmatprep.subr.mxu0 0.0
        %946 = vmatpush1.msra.mxu0 0.0
        %947 = vmatprep.subr.mxu0 0.0
        %948 = vmatpush1.msra.mxu0 0.0
        %949 = vmatprep.subr.mxu0 0.0
        %950 = vmatpush1.msra.mxu0 0.0
        %951 = vmatprep.subr.mxu0 0.0
        %952 = vmatpush1.msra.mxu0 0.0
        %953 = vmatprep.subr.mxu0 0.0
        %954 = vmatpush1.msra.mxu0 0.0
        %955 = vmatprep.subr.mxu0 0.0
        %956 = vmatpush1.msra.mxu0 0.0
        %957 = vmatprep.mubr.f32.mxu0 0.0
        %958 = vmatmul.mubr.f32.gmra.mrb[0].mxu0 %v891
        %v959 = vpop.f32.mrb[0].mxu0
        %v960 = vadd.f32 0.0, %v959
        %v961 = vpop.f32.mrb[0].mxu0
        %962 = vdwg.mxu0
        %v963 = vadd.f32 %v892, %v960
        %964 = vst [vmem:[#allocation2] sm:$0xff] %v963
        %v965 = vmul.f32 %v796, %v875
        %v966 = vmul.f32 %v798, %v876
        %v967 = vmul.f32 %v800, %v877
        %v968 = vmul.f32 %v802, %v878
        %v969 = vmul.f32 %v804, %v879
        %v970 = vmul.f32 %v806, %v880
        %v971 = vmul.f32 %v808, %v881
        %v972 = vmul.f32 %v810, %v882
        %v973 = vmul.f32 %v812, %v883
        %v974 = vmul.f32 %v814, %v884
        %v975 = vmul.f32 %v816, %v885
        %v976 = vmul.f32 %v818, %v886
        %v977 = vmul.f32 %v820, %v887
        %v978 = vmul.f32 %v822, %v888
        %v979 = vmul.f32 %v824, %v889
        %v980 = vmul.f32 %v826, %v890
        %v981 = vmul.f32 %v875, 0.36787945
        %v982 = vmul.f32 %v876, 0.36787945
        %v983 = vmul.f32 %v877, 0.36787945
        %v984 = vmul.f32 %v878, 0.36787945
        %v985 = vmul.f32 %v879, 0.36787945
        %v986 = vmul.f32 %v880, 0.36787945
        %v987 = vmul.f32 %v881, 0.36787945
        %v988 = vmul.f32 %v882, 0.36787945
        %v989 = vmul.f32 %v883, 0.36787945
        %v990 = vmul.f32 %v884, 0.36787945
        %v991 = vmul.f32 %v885, 0.36787945
        %v992 = vmul.f32 %v886, 0.36787945
        %v993 = vmul.f32 %v887, 0.36787945
        %v994 = vmul.f32 %v888, 0.36787945
        %v995 = vmul.f32 %v889, 0.36787945
        %v996 = vmul.f32 %v890, 0.36787945
        %s997 = scalar_lea.vmem %s264, 8
        %v998 = vld [vmem:[%s997] sm:$0xff]
        %v999 = vld [vmem:[#allocation2] sm:$0xff]
        %1000 = vmatprep.subr.mxu0 0.0
        %1001 = vmatpush1.msra.mxu0 %v965
        %1002 = vmatprep.subr.mxu0 0.0
        %1003 = vmatpush1.msra.mxu0 %v966
        %1004 = vmatprep.subr.mxu0 0.0
        %1005 = vmatpush1.msra.mxu0 %v967
        %1006 = vmatprep.subr.mxu0 0.0
        %1007 = vmatpush1.msra.mxu0 %v968
        %1008 = vmatprep.subr.mxu0 0.0
        %1009 = vmatpush1.msra.mxu0 %v969
        %1010 = vmatprep.subr.mxu0 0.0
        %1011 = vmatpush1.msra.mxu0 %v970
        %1012 = vmatprep.subr.mxu0 0.0
        %1013 = vmatpush1.msra.mxu0 %v971
        %1014 = vmatprep.subr.mxu0 0.0
        %1015 = vmatpush1.msra.mxu0 %v972
        %1016 = vmatprep.subr.mxu0 0.0
        %1017 = vmatpush1.msra.mxu0 %v973
        %1018 = vmatprep.subr.mxu0 0.0
        %1019 = vmatpush1.msra.mxu0 %v974
        %1020 = vmatprep.subr.mxu0 0.0
        %1021 = vmatpush1.msra.mxu0 %v975
        %1022 = vmatprep.subr.mxu0 0.0
        %1023 = vmatpush1.msra.mxu0 %v976
        %1024 = vmatprep.subr.mxu0 0.0
        %1025 = vmatpush1.msra.mxu0 %v977
        %1026 = vmatprep.subr.mxu0 0.0
        %1027 = vmatpush1.msra.mxu0 %v978
        %1028 = vmatprep.subr.mxu0 0.0
        %1029 = vmatpush1.msra.mxu0 %v979
        %1030 = vmatprep.subr.mxu0 0.0
        %1031 = vmatpush1.msra.mxu0 %v980
        %1032 = vmatprep.subr.mxu0 0.0
        %1033 = vmatpush1.msra.mxu0 0.0
        %1034 = vmatprep.subr.mxu0 0.0
        %1035 = vmatpush1.msra.mxu0 0.0
        %1036 = vmatprep.subr.mxu0 0.0
        %1037 = vmatpush1.msra.mxu0 0.0
        %1038 = vmatprep.subr.mxu0 0.0
        %1039 = vmatpush1.msra.mxu0 0.0
        %1040 = vmatprep.subr.mxu0 0.0
        %1041 = vmatpush1.msra.mxu0 0.0
        %1042 = vmatprep.subr.mxu0 0.0
        %1043 = vmatpush1.msra.mxu0 0.0
        %1044 = vmatprep.subr.mxu0 0.0
        %1045 = vmatpush1.msra.mxu0 0.0
        %1046 = vmatprep.subr.mxu0 0.0
        %1047 = vmatpush1.msra.mxu0 0.0
        %1048 = vmatprep.subr.mxu0 0.0
        %1049 = vmatpush1.msra.mxu0 0.0
        %1050 = vmatprep.subr.mxu0 0.0
        %1051 = vmatpush1.msra.mxu0 0.0
        %1052 = vmatprep.subr.mxu0 0.0
        %1053 = vmatpush1.msra.mxu0 0.0
        %1054 = vmatprep.subr.mxu0 0.0
        %1055 = vmatpush1.msra.mxu0 0.0
        %1056 = vmatprep.subr.mxu0 0.0
        %1057 = vmatpush1.msra.mxu0 0.0
        %1058 = vmatprep.subr.mxu0 0.0
        %1059 = vmatpush1.msra.mxu0 0.0
        %1060 = vmatprep.subr.mxu0 0.0
        %1061 = vmatpush1.msra.mxu0 0.0
        %1062 = vmatprep.subr.mxu0 0.0
        %1063 = vmatpush1.msra.mxu0 0.0
        %1064 = vmatprep.mubr.f32.mxu0 0.0
        %1065 = vmatmul.mubr.f32.gmra.mrb[0].mxu0 %v998
        %v1066 = vpop.f32.mrb[0].mxu0
        %v1067 = vadd.f32 0.0, %v1066
        %v1068 = vpop.f32.mrb[0].mxu0
        %1069 = vdwg.mxu0
        %v1070 = vadd.f32 %v999, %v1067
        %1071 = vst [vmem:[#allocation2] sm:$0xff] %v1070
        %v1072 = vmul.f32 %v965, %v981
        %v1073 = vmul.f32 %v966, %v982
        %v1074 = vmul.f32 %v967, %v983
        %v1075 = vmul.f32 %v968, %v984
        %v1076 = vmul.f32 %v969, %v985
        %v1077 = vmul.f32 %v970, %v986
        %v1078 = vmul.f32 %v971, %v987
        %v1079 = vmul.f32 %v972, %v988
        %v1080 = vmul.f32 %v973, %v989
        %v1081 = vmul.f32 %v974, %v990
        %v1082 = vmul.f32 %v975, %v991
        %v1083 = vmul.f32 %v976, %v992
        %v1084 = vmul.f32 %v977, %v993
        %v1085 = vmul.f32 %v978, %v994
        %v1086 = vmul.f32 %v979, %v995
        %v1087 = vmul.f32 %v980, %v996
        %v1088 = vmul.f32 %v981, 0.36787945
        %v1089 = vmul.f32 %v982, 0.36787945
        %v1090 = vmul.f32 %v983, 0.36787945
        %v1091 = vmul.f32 %v984, 0.36787945
        %v1092 = vmul.f32 %v985, 0.36787945
        %v1093 = vmul.f32 %v986, 0.36787945
        %v1094 = vmul.f32 %v987, 0.36787945
        %v1095 = vmul.f32 %v988, 0.36787945
        %v1096 = vmul.f32 %v989, 0.36787945
        %v1097 = vmul.f32 %v990, 0.36787945
        %v1098 = vmul.f32 %v991, 0.36787945
        %v1099 = vmul.f32 %v992, 0.36787945
        %v1100 = vmul.f32 %v993, 0.36787945
        %v1101 = vmul.f32 %v994, 0.36787945
        %v1102 = vmul.f32 %v995, 0.36787945
        %v1103 = vmul.f32 %v996, 0.36787945
        %s1104 = scalar_lea.vmem %s264, 16
        %v1105 = vld [vmem:[%s1104] sm:$0xff]
        %v1106 = vld [vmem:[#allocation2] sm:$0xff]
        %1107 = vmatprep.subr.mxu0 0.0
        %1108 = vmatpush1.msra.mxu0 %v1072
        %1109 = vmatprep.subr.mxu0 0.0
        %1110 = vmatpush1.msra.mxu0 %v1073
        %1111 = vmatprep.subr.mxu0 0.0
        %1112 = vmatpush1.msra.mxu0 %v1074
        %1113 = vmatprep.subr.mxu0 0.0
        %1114 = vmatpush1.msra.mxu0 %v1075
        %1115 = vmatprep.subr.mxu0 0.0
        %1116 = vmatpush1.msra.mxu0 %v1076
        %1117 = vmatprep.subr.mxu0 0.0
        %1118 = vmatpush1.msra.mxu0 %v1077
        %1119 = vmatprep.subr.mxu0 0.0
        %1120 = vmatpush1.msra.mxu0 %v1078
        %1121 = vmatprep.subr.mxu0 0.0
        %1122 = vmatpush1.msra.mxu0 %v1079
        %1123 = vmatprep.subr.mxu0 0.0
        %1124 = vmatpush1.msra.mxu0 %v1080
        %1125 = vmatprep.subr.mxu0 0.0
        %1126 = vmatpush1.msra.mxu0 %v1081
        %1127 = vmatprep.subr.mxu0 0.0
        %1128 = vmatpush1.msra.mxu0 %v1082
        %1129 = vmatprep.subr.mxu0 0.0
        %1130 = vmatpush1.msra.mxu0 %v1083
        %1131 = vmatprep.subr.mxu0 0.0
        %1132 = vmatpush1.msra.mxu0 %v1084
        %1133 = vmatprep.subr.mxu0 0.0
        %1134 = vmatpush1.msra.mxu0 %v1085
        %1135 = vmatprep.subr.mxu0 0.0
        %1136 = vmatpush1.msra.mxu0 %v1086
        %1137 = vmatprep.subr.mxu0 0.0
        %1138 = vmatpush1.msra.mxu0 %v1087
        %1139 = vmatprep.subr.mxu0 0.0
        %1140 = vmatpush1.msra.mxu0 0.0
        %1141 = vmatprep.subr.mxu0 0.0
        %1142 = vmatpush1.msra.mxu0 0.0
        %1143 = vmatprep.subr.mxu0 0.0
        %1144 = vmatpush1.msra.mxu0 0.0
        %1145 = vmatprep.subr.mxu0 0.0
        %1146 = vmatpush1.msra.mxu0 0.0
        %1147 = vmatprep.subr.mxu0 0.0
        %1148 = vmatpush1.msra.mxu0 0.0
        %1149 = vmatprep.subr.mxu0 0.0
        %1150 = vmatpush1.msra.mxu0 0.0
        %1151 = vmatprep.subr.mxu0 0.0
        %1152 = vmatpush1.msra.mxu0 0.0
        %1153 = vmatprep.subr.mxu0 0.0
        %1154 = vmatpush1.msra.mxu0 0.0
        %1155 = vmatprep.subr.mxu0 0.0
        %1156 = vmatpush1.msra.mxu0 0.0
        %1157 = vmatprep.subr.mxu0 0.0
        %1158 = vmatpush1.msra.mxu0 0.0
        %1159 = vmatprep.subr.mxu0 0.0
        %1160 = vmatpush1.msra.mxu0 0.0
        %1161 = vmatprep.subr.mxu0 0.0
        %1162 = vmatpush1.msra.mxu0 0.0
        %1163 = vmatprep.subr.mxu0 0.0
        %1164 = vmatpush1.msra.mxu0 0.0
        %1165 = vmatprep.subr.mxu0 0.0
        %1166 = vmatpush1.msra.mxu0 0.0
        %1167 = vmatprep.subr.mxu0 0.0
        %1168 = vmatpush1.msra.mxu0 0.0
        %1169 = vmatprep.subr.mxu0 0.0
        %1170 = vmatpush1.msra.mxu0 0.0
        %1171 = vmatprep.mubr.f32.mxu0 0.0
        %1172 = vmatmul.mubr.f32.gmra.mrb[0].mxu0 %v1105
        %v1173 = vpop.f32.mrb[0].mxu0
        %v1174 = vadd.f32 0.0, %v1173
        %v1175 = vpop.f32.mrb[0].mxu0
        %1176 = vdwg.mxu0
        %v1177 = vadd.f32 %v1106, %v1174
        %1178 = vst [vmem:[#allocation2] sm:$0xff] %v1177
        %v1179 = vmul.f32 %v1072, %v1088
        %v1180 = vmul.f32 %v1073, %v1089
        %v1181 = vmul.f32 %v1074, %v1090
        %v1182 = vmul.f32 %v1075, %v1091
        %v1183 = vmul.f32 %v1076, %v1092
        %v1184 = vmul.f32 %v1077, %v1093
        %v1185 = vmul.f32 %v1078, %v1094
        %v1186 = vmul.f32 %v1079, %v1095
        %v1187 = vmul.f32 %v1080, %v1096
        %v1188 = vmul.f32 %v1081, %v1097
        %v1189 = vmul.f32 %v1082, %v1098
        %v1190 = vmul.f32 %v1083, %v1099
        %v1191 = vmul.f32 %v1084, %v1100
        %v1192 = vmul.f32 %v1085, %v1101
        %v1193 = vmul.f32 %v1086, %v1102
        %v1194 = vmul.f32 %v1087, %v1103
        %s1195 = scalar_lea.vmem %s264, 24
        %v1196 = vld [vmem:[%s1195] sm:$0xff]
        %v1197 = vld [vmem:[#allocation2] sm:$0xff]
        %1198 = vmatprep.subr.mxu0 0.0
        %1199 = vmatpush1.msra.mxu0 %v1179
        %1200 = vmatprep.subr.mxu0 0.0
        %1201 = vmatpush1.msra.mxu0 %v1180
        %1202 = vmatprep.subr.mxu0 0.0
        %1203 = vmatpush1.msra.mxu0 %v1181
        %1204 = vmatprep.subr.mxu0 0.0
        %1205 = vmatpush1.msra.mxu0 %v1182
        %1206 = vmatprep.subr.mxu0 0.0
        %1207 = vmatpush1.msra.mxu0 %v1183
        %1208 = vmatprep.subr.mxu0 0.0
        %1209 = vmatpush1.msra.mxu0 %v1184
        %1210 = vmatprep.subr.mxu0 0.0
        %1211 = vmatpush1.msra.mxu0 %v1185
        %1212 = vmatprep.subr.mxu0 0.0
        %1213 = vmatpush1.msra.mxu0 %v1186
        %1214 = vmatprep.subr.mxu0 0.0
        %1215 = vmatpush1.msra.mxu0 %v1187
        %1216 = vmatprep.subr.mxu0 0.0
        %1217 = vmatpush1.msra.mxu0 %v1188
        %1218 = vmatprep.subr.mxu0 0.0
        %1219 = vmatpush1.msra.mxu0 %v1189
        %1220 = vmatprep.subr.mxu0 0.0
        %1221 = vmatpush1.msra.mxu0 %v1190
        %1222 = vmatprep.subr.mxu0 0.0
        %1223 = vmatpush1.msra.mxu0 %v1191
        %1224 = vmatprep.subr.mxu0 0.0
        %1225 = vmatpush1.msra.mxu0 %v1192
        %1226 = vmatprep.subr.mxu0 0.0
        %1227 = vmatpush1.msra.mxu0 %v1193
        %1228 = vmatprep.subr.mxu0 0.0
        %1229 = vmatpush1.msra.mxu0 %v1194
        %1230 = vmatprep.subr.mxu0 0.0
        %1231 = vmatpush1.msra.mxu0 0.0
        %1232 = vmatprep.subr.mxu0 0.0
        %1233 = vmatpush1.msra.mxu0 0.0
        %1234 = vmatprep.subr.mxu0 0.0
        %1235 = vmatpush1.msra.mxu0 0.0
        %1236 = vmatprep.subr.mxu0 0.0
        %1237 = vmatpush1.msra.mxu0 0.0
        %1238 = vmatprep.subr.mxu0 0.0
        %1239 = vmatpush1.msra.mxu0 0.0
        %1240 = vmatprep.subr.mxu0 0.0
        %1241 = vmatpush1.msra.mxu0 0.0
        %1242 = vmatprep.subr.mxu0 0.0
        %1243 = vmatpush1.msra.mxu0 0.0
        %1244 = vmatprep.subr.mxu0 0.0
        %1245 = vmatpush1.msra.mxu0 0.0
        %1246 = vmatprep.subr.mxu0 0.0
        %1247 = vmatpush1.msra.mxu0 0.0
        %1248 = vmatprep.subr.mxu0 0.0
        %1249 = vmatpush1.msra.mxu0 0.0
        %1250 = vmatprep.subr.mxu0 0.0
        %1251 = vmatpush1.msra.mxu0 0.0
        %1252 = vmatprep.subr.mxu0 0.0
        %1253 = vmatpush1.msra.mxu0 0.0
        %1254 = vmatprep.subr.mxu0 0.0
        %1255 = vmatpush1.msra.mxu0 0.0
        %1256 = vmatprep.subr.mxu0 0.0
        %1257 = vmatpush1.msra.mxu0 0.0
        %1258 = vmatprep.subr.mxu0 0.0
        %1259 = vmatpush1.msra.mxu0 0.0
        %1260 = vmatprep.subr.mxu0 0.0
        %1261 = vmatpush1.msra.mxu0 0.0
        %1262 = vmatprep.mubr.f32.mxu0 0.0
        %1263 = vmatmul.mubr.f32.gmra.mrb[0].mxu0 %v1196
        %v1264 = vpop.f32.mrb[0].mxu0
        %v1265 = vadd.f32 0.0, %v1264
        %v1266 = vpop.f32.mrb[0].mxu0
        %1267 = vdwg.mxu0
        %v1268 = vadd.f32 %v1197, %v1265
        %1269 = vst [vmem:[#allocation2] sm:$0xff] %v1268
        // Predicated region
        $region37: #{tpu_custom_call.1} parent=31 // pred_check
          %p1270 = pneg %p265
        $region38: #{tpu_custom_call.1} parent=31 // pred_check_branch
          %1272 = sbr.rel (%p1270) target = $region40
        $region39: #{tpu_custom_call.1} parent=31 // pred_region
          %v1273 = vld [vmem:[#allocation2] sm:$0xff]
          %1274 = vst [vmem:[%s239] sm:$0xff] %v1273
        $region40: #{tpu_custom_call.1} parent=31 // pred_fallthru
          _
        %s1275 = sand.u32 %s130, 1
        %s1276 = scalar_lea.sflag [#allocation4], %s1275
        %s1277 = sand.u32 %s130, 1
        %s1278 = smul.addr %s1277, 8
        %s1279 = scalar_lea.vmem [#allocation3], %s1278
        // Predicated region
        $region41: #{tpu_custom_call.1} parent=31 // pred_check
          %p1280 = pneg %p140
        $region42: #{tpu_custom_call.1} parent=31 // pred_check_branch
          %1282 = sbr.rel (%p1280) target = $region44
        $region43: #{tpu_custom_call.1} parent=31 // pred_region
          %s1284 = ssub.s32 128, 128
          %1285 = vsyncadd %s1276, %s1284
          %s1286 = sadd.s32 %s23, %s22
          %s1287 = smul.addr %s1286, 128
          %s1288 = scalar_lea.hbm %s3, %s1287
          %s1290 = sshll.u32 %s1279, 4
          %s1291 = int_to_ptr.vmem [resolvable:$true] %s1290
          %1293 = dma.vmem_to_hbm [thread:$0]  %s1291, 128, %s1288, %s1276
        $region44: #{tpu_custom_call.1} parent=31 // pred_fallthru
          _
      $region32: #{tpu_custom_call.1} parent=5 // pred_fallthru
        _
      %p1294 = scmp.le.s32.totalorder 2, %s12
      // Predicated region
      $region45: #{tpu_custom_call.1} parent=5 // pred_check
        %p1295 = pneg %p1294
      $region46: #{tpu_custom_call.1} parent=5 // pred_check_branch
        %1297 = sbr.rel (%p1295) target = $region48
      $region47: #{tpu_custom_call.1} parent=5 // pred_region
        %s1298 = ssub.s32 %s12, 2
        // Predicated region
        $region49: #{tpu_custom_call.1} parent=47 // pred_check
          %p1299 = pneg %p146
        $region50: #{tpu_custom_call.1} parent=47 // pred_check_branch
          %1301 = sbr.rel (%p1299) target = $region52
        $region51: #{tpu_custom_call.1} parent=47 // pred_region
          %s1302 = sand.u32 %s131, 1
          %s1303 = scalar_lea.sflag [#allocation4], %s1302
          %s1304 = sand.u32 %s131, 1
          %s1305 = smul.addr %s1304, 8
          %s1306 = scalar_lea.vmem [#allocation3], %s1305
          %1307 = dma.done %s1303, 128
        $region52: #{tpu_custom_call.1} parent=47 // pred_fallthru
          _
      $region48: #{tpu_custom_call.1} parent=5 // pred_fallthru
        _
    $region6: #{tpu_custom_call.1} parent=1 // loop_footer
      %s16 = sadd.s32 1, %s12
    $region7: #{tpu_custom_call.1} parent=1 // loop_footer_branch
      %11 = sbr.rel target = $region3
    $region8: #{tpu_custom_call.1} parent=1 // loop_exit
      _
    %1308 = vsyncpa [#allocation4], 1
    %s1309 = scalar_lea.sflag [#allocation4], 1
    %1310 = vsyncpa %s1309, 1

</llo_original>
